<compile_context>
chip_gen: v7x
topology: tpu7x:2x2x1
jax: 0.10.0
libtpu: 0.0.40
codegen_flags: <defaults>
</compile_context>

<pallas_src>
import functools
import math

import jax
import jax.numpy as jnp
from jax.experimental import pallas as pl
from jax.experimental.pallas import tpu as pltpu


VMEM_LIMIT = 32 * 1024 * 1024   # scoped-VMEM budget: safe on v5e/v6e/v7x
NOUT_PAD = 128                  # lane-dense padded per-head output width (cls | box)
MAX_TK = 2048                   # K-axis tile cap (w1 block 4 MiB bf16, x2 buffers)
ROW_TILE_TARGET = 256           # match v6e/v7x 256x256 MXU (harmless on v5e)


def _round_up(x, m):
    return (x + m - 1) // m * m


def _row_tile(m, target=ROW_TILE_TARGET):
    """Row tile <= target that never forces an unnecessary split.

    m <= target -> a single block of round_up(m, 16) rows (bf16 sublane pack);
    m  > target -> near-even blocks of <= target rows, multiples of 16.
    """
    m = max(m, 16)
    blocks = -(-m // target)
    return _round_up(-(-m // blocks), 16)


def _const_spec(shape, index_map):
    """BlockSpec for a grid-invariant operand; single-buffered when supported."""
    if hasattr(pl, "Buffered"):
        try:
            return pl.BlockSpec(shape, index_map, pipeline_mode=pl.Buffered(1))
        except TypeError:
            pass
    return pl.BlockSpec(shape, index_map)


# ---------------------------------------------------------------------------
# Fused ROI heads: Flatten -> [cls | box] Linear -> ReLU -> Linear
# Column-split over the two heads (parallel axis j) -> each TC streams half of
# the fused first-layer weight; K is the innermost reduction axis.
# ---------------------------------------------------------------------------
def _roi_head_kernel(x_ref, w1_ref, b1_ref, w2_ref, b2_ref, o_ref, acc_ref):
    k = pl.program_id(2)

    @pl.when(k == 0)
    def _():
        acc_ref[...] = jnp.zeros_like(acc_ref)

    # bf16 MXU matmul, f32 accumulation
    acc_ref[...] += jnp.dot(x_ref[...], w1_ref[...],
                            preferred_element_type=jnp.float32)

    @pl.when(k == pl.num_programs(2) - 1)
    def _():
        h = jnp.maximum(acc_ref[...] + b1_ref[...], 0.0)       # f32 bias/ReLU (v5e-safe)
        y = jnp.dot(h.astype(jnp.bfloat16), w2_ref[...],
                    preferred_element_type=jnp.float32)
        o_ref[...] = (y + b2_ref[...]).astype(o_ref.dtype)


def pack_roi_head_weights(cls_w1, cls_b1, cls_w2, cls_b2,
                          box_w1, box_b1, box_w2, box_b2, num_classes):
    """One-time packing + bf16 cast of both ROI-head layers (call at __init__)."""
    K, H = cls_w1.shape
    Hp = _round_up(H, 128)
    k_steps = max(1, -(-K // MAX_TK))
    tk = _round_up(-(-K // k_steps), 256)
    k_pad = tk * k_steps

    # first layer: [cls | box] columns so the (R,K) activation is read once;
    # each column half is a separate "parallel" block (j axis).
    w1 = jnp.zeros((k_pad, 2 * Hp), jnp.float32)
    w1 = w1.at[:K, :H].set(cls_w1)
    w1 = w1.at[:K, Hp:Hp + H].set(box_w1)
    b1 = jnp.zeros((1, 2 * Hp), jnp.float32)
    b1 = b1.at[0, :H].set(cls_b1)
    b1 = b1.at[0, Hp:Hp + H].set(box_b1)

    # second layer: per-head (Hp, 128) blocks, stacked; each head gets its own
    # lane-dense 128-wide output slab.
    w2 = jnp.zeros((2 * Hp, NOUT_PAD), jnp.float32)
    w2 = w2.at[:H, :num_classes].set(cls_w2)
    w2 = w2.at[Hp:Hp + H, :4].set(box_w2)
    b2 = jnp.zeros((1, 2 * NOUT_PAD), jnp.float32)
    b2 = b2.at[0, :num_classes].set(cls_b2)
    b2 = b2.at[0, NOUT_PAD:NOUT_PAD + 4].set(box_b2)

    return dict(w1=w1.astype(jnp.bfloat16), b1=b1,
                w2=w2.astype(jnp.bfloat16), b2=b2,
                K=K, k_pad=k_pad, tk=tk, k_steps=k_steps, Hp=Hp,
                num_classes=num_classes)


def pallas_roi_heads(flat, packed):
    """Runs both ROI heads with one read of `flat`. Returns (cls_scores, box_reg)."""
    R, K = flat.shape
    assert K == packed["K"]
    Hp, tk = packed["Hp"], packed["tk"]
    k_pad, k_steps = packed["k_pad"], packed["k_steps"]
    nc = packed["num_classes"]

    tm = _row_tile(R)                      # single row block when R <= 256
    r_pad = _round_up(R, tm)
    x = jnp.pad(flat, ((0, r_pad - R), (0, k_pad - K))).astype(jnp.bfloat16)

    out = pl.pallas_call(
        _roi_head_kernel,
        out_shape=jax.ShapeDtypeStruct((r_pad, 2 * NOUT_PAD), jnp.float32),
        grid_spec=pltpu.PrefetchScalarGridSpec(
            num_scalar_prefetch=0,
            grid=(r_pad // tm, 2, k_steps),
            in_specs=[
                pl.BlockSpec((tm, tk), lambda i, j, k: (i, k)),
                pl.BlockSpec((tk, Hp), lambda i, j, k: (k, j)),
                pl.BlockSpec((1, Hp), lambda i, j, k: (0, j)),
                pl.BlockSpec((Hp, NOUT_PAD), lambda i, j, k: (j, 0)),
                pl.BlockSpec((1, NOUT_PAD), lambda i, j, k: (0, j)),
            ],
            out_specs=pl.BlockSpec((tm, NOUT_PAD), lambda i, j, k: (i, j)),
            scratch_shapes=[pltpu.VMEM((tm, Hp), jnp.float32)],
        ),
        compiler_params=pltpu.CompilerParams(
            dimension_semantics=("parallel", "parallel", "arbitrary"),
            vmem_limit_bytes=VMEM_LIMIT),
    )(x, packed["w1"], packed["b1"], packed["w2"], packed["b2"])

    class_scores = out[:R, :nc]
    box_regression = out[:R, NOUT_PAD:NOUT_PAD + 4]
    return class_scores, box_regression


# ---------------------------------------------------------------------------
# Fused mask head: ConvT(2,2,s2) -> ReLU -> ConvT(2,2,s2), per input pixel.
# stride == kernel == 2, so no overlapping taps: exact per-pixel matmuls.
# ---------------------------------------------------------------------------
def _mask_head_kernel(x_ref, w1_ref, b1_ref, w2_ref, b2_ref, o_ref, *, ch, wout):
    # first conv-transpose as one matmul over all 4 (d1i,d1j) subpixel offsets
    h = jnp.dot(x_ref[...], w1_ref[...], preferred_element_type=jnp.float32)
    h = jnp.maximum(h + b1_ref[...], 0.0)                        # (tm, 4*ch) f32
    hb = h.astype(jnp.bfloat16)
    w2 = w2_ref[...]
    b2 = b2_ref[...]
    # second conv-transpose: one matmul per first-layer subpixel offset,
    # each store is a 128-lane-dense slab (wout == 128).
    for d1 in range(4):
        y = jnp.dot(hb[:, d1 * ch:(d1 + 1) * ch], w2,
                    preferred_element_type=jnp.float32)
        o_ref[:, d1 * wout:(d1 + 1) * wout] = (y + b2).astype(o_ref.dtype)


def pack_mask_head_weights(w1_pt, b1, w2_pt, b2, num_classes):
    """Pack PyTorch ConvTranspose2d weights for per-pixel matmuls (at __init__)."""
    cin, ch = w1_pt.shape[0], w1_pt.shape[1]
    cout_pad = _round_up(num_classes, 32)                        # 4*cout_pad == 128
    wout = 4 * cout_pad
    w1p = jnp.transpose(w1_pt, (0, 2, 3, 1)).reshape(cin, 4 * ch)      # (d1i,d1j,hc)
    b1p = jnp.tile(b1, 4).reshape(1, 4 * ch)
    w2t = jnp.transpose(w2_pt, (0, 2, 3, 1))                           # (ch,2,2,Cout)
    w2t = jnp.pad(w2t, ((0, 0), (0, 0), (0, 0), (0, cout_pad - num_classes)))
    w2p = w2t.reshape(ch, wout)                                        # (d2i,d2j,c)
    b2p = jnp.tile(jnp.pad(b2, (0, cout_pad - num_classes)), 4).reshape(1, wout)
    return dict(w1=w1p.astype(jnp.bfloat16), b1=b1p.astype(jnp.float32),
                w2=w2p.astype(jnp.bfloat16), b2=b2p.astype(jnp.float32),
                cin=cin, ch=ch, cout_pad=cout_pad, wout=wout)


def pallas_mask_head(x, packed):
    """x: (M, Cin) per-pixel features (NHWC reshape). Returns ((M, 16*cpad) bf16, cpad).

    Output columns are ordered (d1i, d1j, d2i, d2j, c); output pixel is
    (4i + 2*d1i + d2i, 4j + 2*d1j + d2j).
    """
    M, cin = x.shape
    assert cin == packed["cin"]
    ch, wout, cout_pad = packed["ch"], packed["wout"], packed["cout_pad"]

    tm = _row_tile(M)
    m_pad = _round_up(M, tm)
    x_p = jnp.pad(x, ((0, m_pad - M), (0, 0))).astype(jnp.bfloat16)

    out = pl.pallas_call(
        functools.partial(_mask_head_kernel, ch=ch, wout=wout),
        out_shape=jax.ShapeDtypeStruct((m_pad, 4 * wout), jnp.bfloat16),
        grid_spec=pltpu.PrefetchScalarGridSpec(
            num_scalar_prefetch=0,
            grid=(m_pad // tm,),
            in_specs=[
                pl.BlockSpec((tm, cin), lambda i: (i, 0)),
                _const_spec((cin, 4 * ch), lambda i: (0, 0)),    # grid-invariant:
                _const_spec((1, 4 * ch), lambda i: (0, 0)),      # single-buffered
                _const_spec((ch, wout), lambda i: (0, 0)),
                _const_spec((1, wout), lambda i: (0, 0)),
            ],
            out_specs=pl.BlockSpec((tm, 4 * wout), lambda i: (i, 0)),
        ),
        compiler_params=pltpu.CompilerParams(
            dimension_semantics=("parallel",),
            vmem_limit_bytes=VMEM_LIMIT),
    )(x_p, packed["w1"], packed["b1"], packed["w2"], packed["b2"])
    return out[:M], cout_pad


# ---------------------------------------------------------------------------
# project_bboxes: lane-dense elementwise kernel (preserves -1 padding boxes)
# ---------------------------------------------------------------------------
_PROJ_LANES = 128
_PROJ_MAX_ROWS = 256            # big blocks -> near HBM roofline, few grid steps


def _project_kernel(boxes_ref, scale_ref, o_ref):
    b = boxes_ref[...]
    o_ref[...] = jnp.where(b == -1.0, -1.0, b * scale_ref[...])


def project_bboxes_pallas(bboxes, width_scale_factor, height_scale_factor,
                          mode="a2p"):
    assert mode in ("a2p", "p2a")
    shape = bboxes.shape
    total = int(math.prod(shape))
    w = float(width_scale_factor)
    h = float(height_scale_factor)
    if mode == "p2a":
        w, h = 1.0 / w, 1.0 / h

    rows = -(-total // _PROJ_LANES)
    block_rows = min(_PROJ_MAX_ROWS, _round_up(rows, 8))
    rows_pad = _round_up(rows, block_rows)
    total_pad = rows_pad * _PROJ_LANES
    flat = jnp.pad(bboxes.reshape(-1).astype(jnp.float32),
                   (0, total_pad - total), constant_values=-1.0)
    # [w,h,w,h] tiled across 128 lanes (coord dim 4 divides 128)
    scale = jnp.tile(jnp.array([w, h, w, h], jnp.float32),
                     _PROJ_LANES // 4).reshape(1, _PROJ_LANES)

    out = pl.pallas_call(
        _project_kernel,
        out_shape=jax.ShapeDtypeStruct((rows_pad, _PROJ_LANES), jnp.float32),
        grid_spec=pltpu.PrefetchScalarGridSpec(
            num_scalar_prefetch=0,
            grid=(rows_pad // block_rows,),
            in_specs=[
                pl.BlockSpec((block_rows, _PROJ_LANES), lambda i: (i, 0)),
                _const_spec((1, _PROJ_LANES), lambda i: (0, 0)),
            ],
            out_specs=pl.BlockSpec((block_rows, _PROJ_LANES), lambda i: (i, 0)),
        ),
        compiler_params=pltpu.CompilerParams(
            dimension_semantics=("parallel",)),
    )(flat.reshape(rows_pad, _PROJ_LANES), scale)
    return out.reshape(-1)[:total].reshape(shape)


# ---------------------------------------------------------------------------
# plain-JAX glue (cheap index math)
# ---------------------------------------------------------------------------
def gen_anc_centers(out_size):
    out_h, out_w = out_size
    anc_pts_x = jnp.arange(out_w, dtype=jnp.float32) + 0.5
    anc_pts_y = jnp.arange(out_h, dtype=jnp.float32) + 0.5
    return anc_pts_x, anc_pts_y


def gen_anc_base(anc_pts_x, anc_pts_y, anc_scales, anc_ratios, out_size):
    scales = jnp.array(anc_scales, jnp.float32)
    ratios = jnp.array(anc_ratios, jnp.float32)
    w = (scales[:, None] * ratios[None, :]).reshape(-1)          # (A,)
    h = jnp.broadcast_to(scales[:, None],
                         (scales.shape[0], ratios.shape[0])).reshape(-1)
    xc = anc_pts_x[:, None, None]
    yc = anc_pts_y[None, :, None]
    xmin, ymin = xc - w / 2.0, yc - h / 2.0
    xmax, ymax = xc + w / 2.0, yc + h / 2.0
    boxes = jnp.stack(jnp.broadcast_arrays(xmin, ymin, xmax, ymax), axis=-1)
    out_h, out_w = out_size                                      # clip_boxes_to_image
    boxes = jnp.stack([
        jnp.clip(boxes[..., 0], 0.0, float(out_w)),
        jnp.clip(boxes[..., 1], 0.0, float(out_h)),
        jnp.clip(boxes[..., 2], 0.0, float(out_w)),
        jnp.clip(boxes[..., 3], 0.0, float(out_h)),
    ], axis=-1)
    return boxes[None]                                           # (1, X, Y, A, 4)


# ---------------------------------------------------------------------------
# Model
# ---------------------------------------------------------------------------
class MaskRCNNPallas:
    """Pallas re-implementation of the well-defined compute in MaskRCNN.forward."""

    def __init__(self, num_classes, backbone_out_channels, hidden, key):
        self.num_classes = num_classes
        self.C = backbone_out_channels
        self.pool = 7
        K = backbone_out_channels * self.pool * self.pool
        ks = jax.random.split(key, 6)
        s = 0.02
        f32 = jnp.float32
        # classification_head: Linear(K,hidden) -> ReLU -> Linear(hidden,num_classes)
        cls_w1 = (s * jax.random.normal(ks[0], (K, hidden))).astype(f32)
        cls_b1 = jnp.zeros((hidden,), f32)
        cls_w2 = (s * jax.random.normal(ks[1], (hidden, num_classes))).astype(f32)
        cls_b2 = jnp.zeros((num_classes,), f32)
        # bbox_head: Linear(K,hidden) -> ReLU -> Linear(hidden,4)
        box_w1 = (s * jax.random.normal(ks[2], (K, hidden))).astype(f32)
        box_b1 = jnp.zeros((hidden,), f32)
        box_w2 = (s * jax.random.normal(ks[3], (hidden, 4))).astype(f32)
        box_b2 = jnp.zeros((4,), f32)
        # mask_head: ConvT(C,256,2,2,s=2) -> ReLU -> ConvT(256,num_classes,2,2,s=2)
        mk_w1 = (s * jax.random.normal(
            ks[4], (backbone_out_channels, 256, 2, 2))).astype(f32)
        mk_b1 = jnp.zeros((256,), f32)
        mk_w2 = (s * jax.random.normal(ks[5], (256, num_classes, 2, 2))).astype(f32)
        mk_b2 = jnp.zeros((num_classes,), f32)

        # Pre-pack + pre-cast ALL kernel weights once (not per forward).
        self.roi_packed = pack_roi_head_weights(
            cls_w1, cls_b1, cls_w2, cls_b2,
            box_w1, box_b1, box_w2, box_b2, num_classes)
        self.mask_packed = pack_mask_head_weights(
            mk_w1, mk_b1, mk_w2, mk_b2, num_classes)
        # TODO(synk): FeatureExtractor (ResNet50 backbone) requires pretrained
        # checkpoint weights; backbone features are taken as inputs instead.

    def forward(self, features_nhwc, box_features_nchw, image_hw):
        # features_nhwc: (B, H, W, C) backbone features (NHWC avoids a transpose
        # pass before the per-pixel mask head).
        B, out_h, out_w, C = features_nhwc.shape
        assert C == self.C
        img_h, img_w = image_hw
        width_scale_factor = img_w // out_w       # integer //, as in the reference
        height_scale_factor = img_h // out_h

        # ---- anchor bookkeeping (plotting path in the reference) ----
        anc_pts_x, anc_pts_y = gen_anc_centers(out_size=(out_h, out_w))
        anc_scales, anc_ratios = [2, 4, 6], [0.5, 1, 1.5]
        anc_base = gen_anc_base(anc_pts_x, anc_pts_y, anc_scales, anc_ratios,
                                (out_h, out_w))
        # Project the batch-1 base once; broadcast to B afterwards (B x less traffic).
        anc_base_proj = project_bboxes_pallas(
            anc_base, width_scale_factor, height_scale_factor, mode="a2p")
        anc_boxes_proj = jnp.broadcast_to(anc_base_proj,
                                          (B,) + anc_base_proj.shape[1:])
        # TODO(synk): get_req_anchors / RPN / det_utils.proposals_from_rpn_output /
        # MultiScaleRoIAlign are undefined in the reference; pooled ROI features
        # are taken as input instead.

        # ---- fused ROI heads (Flatten -> Linear -> ReLU -> Linear, cls + box) ----
        R = box_features_nchw.shape[0]
        flat = box_features_nchw.reshape(R, -1)   # NCHW flatten = nn.Flatten()
        class_scores, box_regression = pallas_roi_heads(flat, self.roi_packed)

        # ---- fused mask head on features[-1] (unbatched, as in the reference) ----
        feats_last = features_nhwc[-1]                                  # (H, W, C)
        Hf, Wf = feats_last.shape[0], feats_last.shape[1]
        x_pix = feats_last.reshape(Hf * Wf, C)                          # free reshape
        y, cpad = pallas_mask_head(x_pix, self.mask_packed)
        # y columns ordered (d1i, d1j, d2i, d2j, c) -> pixel (4i+2d1i+d2i, 4j+2d1j+d2j)
        y = y.reshape(Hf, Wf, 2, 2, 2, 2, cpad)
        y = jnp.transpose(y, (0, 2, 4, 1, 3, 5, 6)).reshape(4 * Hf, 4 * Wf, cpad)
        mask_scores = jnp.transpose(y[..., :self.num_classes], (2, 0, 1))
        # TODO(synk): F.interpolate(mask_features, size=proposals.shape[-2:]) skipped —
        # `proposals` comes from the undefined RPN path.

        result = {
            "boxes": box_regression,
            "labels": jnp.argmax(class_scores, axis=1),
            "masks": mask_scores,
        }
        aux = {"anc_boxes_proj": anc_boxes_proj}
        return result, aux


# ---------------------------------------------------------------------------
if __name__ == "__main__":
    key = jax.random.PRNGKey(0)
    k_model, k_feat, k_roi = jax.random.split(key, 3)

    num_classes = 21
    # Small, structure-preserving shapes (module uses 2048-ch backbone, 1024 hidden).
    B, C, Hf, Wf = 2, 128, 8, 8          # backbone features (NHWC)
    R = 16                               # number of pooled ROIs
    hidden = 256
    image_hw = (Hf * 32, Wf * 32)        # ResNet50 stride-32 convention

    model = MaskRCNNPallas(num_classes, backbone_out_channels=C,
                           hidden=hidden, key=k_model)

    features = jax.random.normal(k_feat, (B, Hf, Wf, C), dtype=jnp.float32)
    box_features = jax.random.normal(k_roi, (R, C, 7, 7), dtype=jnp.float32)

    result, aux = model.forward(features, box_features, image_hw)
    jax.block_until_ready((result, aux))

    assert result["boxes"].shape == (R, 4)
    assert result["labels"].shape == (R,)
    assert result["masks"].shape == (num_classes, 4 * Hf, 4 * Wf)
    assert aux["anc_boxes_proj"].shape == (B, Wf, Hf, 9, 4)
    print("KERNEL_OK")
</pallas_src>

<mosaic_0001>
module attributes {stable_mosaic.version = 11 : i64} {
  func.func @_project_kernel(%arg0: i32, %arg1: memref<24x128xf32, #tpu.memory_space<vmem>>, %arg2: memref<1x128xf32, #tpu.memory_space<vmem>>, %arg3: memref<24x128xf32, #tpu.memory_space<vmem>>) attributes {dimension_semantics = [#tpu.dimension_semantics<parallel>], iteration_bounds = array<i64: 1>, scalar_prefetch = 0 : i64, scratch_operands = 0 : i64, tpu.core_type = #tpu.core_type<tc>, window_params = [{transform_indices = @transform_0, window_bounds = array<i64: 24, 128>}, {pipeline_mode = #tpu.pipeline_mode<synchronous>, transform_indices = @transform_1, window_bounds = array<i64: 1, 128>}, {transform_indices = @transform_2, window_bounds = array<i64: 24, 128>}]} {
    %c0 = arith.constant 0 : index
    %c0_0 = arith.constant 0 : index
    %0 = vector.load %arg1[%c0, %c0_0] : memref<24x128xf32, #tpu.memory_space<vmem>>, vector<24x128xf32>
    %cst = arith.constant -1.000000e+00 : f32
    %1 = vector.broadcast %cst : f32 to vector<24x128xf32>
    %2 = arith.cmpf oeq, %0, %1 : vector<24x128xf32>
    %c0_1 = arith.constant 0 : index
    %c0_2 = arith.constant 0 : index
    %3 = vector.load %arg2[%c0_1, %c0_2] : memref<1x128xf32, #tpu.memory_space<vmem>>, vector<1x128xf32>
    %4 = vector.broadcast %3 : vector<1x128xf32> to vector<24x128xf32>
    %5 = arith.mulf %0, %4 : vector<24x128xf32>
    %cst_3 = arith.constant -1.000000e+00 : f32
    %6 = vector.broadcast %cst_3 : f32 to vector<24x128xf32>
    %7 = arith.select %2, %6, %5 : vector<24x128xi1>, vector<24x128xf32>
    %c0_4 = arith.constant 0 : index
    %c0_5 = arith.constant 0 : index
    %8 = vector.load %arg3[%c0_4, %c0_5] : memref<24x128xf32, #tpu.memory_space<vmem>>, vector<24x128xf32>
    tpu.vector_store %arg3[%c0_4, %c0_5], %7 {strides = array<i32>} : memref<24x128xf32, #tpu.memory_space<vmem>>, vector<24x128xf32>,
    return
  }
  func.func @transform_0(%arg0: i32) -> (i32, i32) {
    %c0_i32 = arith.constant 0 : i32
    %c0_i32_0 = arith.constant 0 : i32
    return %arg0, %c0_i32 : i32, i32
  }
  func.func @transform_1(%arg0: i32) -> (i32, i32) {
    %c0_i32 = arith.constant 0 : i32
    %c0_i32_0 = arith.constant 0 : i32
    %c0_i32_1 = arith.constant 0 : i32
    return %c0_i32, %c0_i32_0 : i32, i32
  }
  func.func @transform_2(%arg0: i32) -> (i32, i32) {
    %c0_i32 = arith.constant 0 : i32
    %c0_i32_0 = arith.constant 0 : i32
    return %arg0, %c0_i32 : i32, i32
  }
}

</mosaic_0001>

<llo_original>
// kernel: tpu_custom_call.1
$region0: #{tpu_custom_call.1}
  #allocation0 [shape = 'u32[]', space=smem, size = 0x4, offset = 0x4, fixed_abs, tag = 'smem constant byte address 0x4 - core index']
  #allocation1 [shape = 'u32[144,128]{1,0:T(1,128)}', space=vmem, size = 0x12000, scoped, tag = 'internal scratch']
  %s0 = inlined_call_operand.hbm [shape: f32[24,128], index: 0, kind: input, shape index: {}]
  %s1 = inlined_call_operand.vmem [shape: f32[1,128], index: 1, kind: input, shape index: {}]
  %s2 = inlined_call_operand.hbm [shape: f32[24,128], index: 2, kind: output, shape index: {}]
  %s3 = sld [smem:[#allocation0]]
  $region22: #{tpu_custom_call.1} parent=0
    _
  %s5 = ssub.s32 1, %s3
  %s6 = scalar_select 0, %s5, %s3
  $region1: #{tpu_custom_call.1} parent=0
    #allocation2 [shape = 'u8[12288]{0}', space=vmem, size = 0x3000, scoped, tag = 'input window, operand 0, single buffered']
    #allocation3 [shape = 's32[1]{0}', space=sflag, size = 0x4, scoped, tag = 'scoped memory for tpu_custom_call.1']
    #allocation4 [shape = 's32[1]{0}', space=sflag, size = 0x4, scoped, tag = 'scoped memory for tpu_custom_call.1']
    #allocation5 [shape = 'u8[12288]{0}', space=vmem, size = 0x3000, scoped, tag = 'output window, operand 0, single buffered']
    %7 = vsyncpa [#allocation3], 0
    %8 = vsyncpa [#allocation4], 0
    // Predicated region
    $region2: #{tpu_custom_call.1} parent=1 // pred_check
      _
    $region3: #{tpu_custom_call.1} parent=1 // pred_check_branch
      %10 = sbr.rel (0) target = $region5
    $region4: #{tpu_custom_call.1} parent=1 // pred_region
      %s12 = ssub.s32 384, 384
      %13 = vsyncadd [#allocation3], %s12
      %s14 = sshll.u32 [#allocation2], 4
      %s15 = int_to_ptr.vmem [resolvable:$true] %s14
      %20 = dma.hbm_to_vmem [thread:$0]  %s0, 384, %s15, [#allocation3], 128, 128, 8
    $region5: #{tpu_custom_call.1} parent=1 // pred_fallthru
      _
    // Predicated region
    $region6: #{tpu_custom_call.1} parent=1 // pred_check
      _
    $region7: #{tpu_custom_call.1} parent=1 // pred_check_branch
      %22 = sbr.rel (0) target = $region9
    $region8: #{tpu_custom_call.1} parent=1 // pred_region
      _
    $region9: #{tpu_custom_call.1} parent=1 // pred_fallthru
      _
    // Predicated region
    $region10: #{tpu_custom_call.1} parent=1 // pred_check
      _
    $region11: #{tpu_custom_call.1} parent=1 // pred_check_branch
      %24 = sbr.rel (0) target = $region13
    $region12: #{tpu_custom_call.1} parent=1 // pred_region
      %25 = dma.done [#allocation3], 384
    $region13: #{tpu_custom_call.1} parent=1 // pred_fallthru
      _
    %v26 = vld [vmem:[#allocation2] sm:$0xff]
    %v27 = vld [vmem:[#allocation2 + $0x8] sm:$0xff]
    %v28 = vld [vmem:[#allocation2 + $0x10] sm:$0xff]
    %vm29 = vcmp.eq.f32.partialorder %v26, -1.0
    %vm30 = vcmp.eq.f32.partialorder %v27, -1.0
    %vm31 = vcmp.eq.f32.partialorder %v28, -1.0
    %v32 = vld [vmem:[%s1] sm:$0x1]
    %v34 = vlaneseq
    %v35 = vshrl.u32 %v34, 7
    %v36 = vsub.s32 0, %v35
    %v37 = vrot.slane %v32, %v36
    %v39 = vmul.f32 %v26, %v37
    %v40 = vmul.f32 %v27, %v37
    %v41 = vmul.f32 %v28, %v37
    %v42 = vsel %vm29, -1.0, %v39
    %v43 = vsel %vm30, -1.0, %v40
    %v44 = vsel %vm31, -1.0, %v41
    %45 = vst [vmem:[#allocation5] sm:$0xff] %v42
    %46 = vst [vmem:[#allocation5 + $0x8] sm:$0xff] %v43
    %47 = vst [vmem:[#allocation5 + $0x10] sm:$0xff] %v44
    // Predicated region
    $region14: #{tpu_custom_call.1} parent=1 // pred_check
      _
    $region15: #{tpu_custom_call.1} parent=1 // pred_check_branch
      %49 = sbr.rel (0) target = $region17
    $region16: #{tpu_custom_call.1} parent=1 // pred_region
      %s51 = ssub.s32 384, 384
      %52 = vsyncadd [#allocation4], %s51
      %s53 = sshll.u32 [#allocation5], 4
      %s54 = int_to_ptr.vmem [resolvable:$true] %s53
      %59 = dma.vmem_to_hbm [thread:$0]  %s54, 384, %s2, [#allocation4], 128, 128, 8
    $region17: #{tpu_custom_call.1} parent=1 // pred_fallthru
      _
    // Predicated region
    $region18: #{tpu_custom_call.1} parent=1 // pred_check
      _
    $region19: #{tpu_custom_call.1} parent=1 // pred_check_branch
      %61 = sbr.rel (0) target = $region21
    $region20: #{tpu_custom_call.1} parent=1 // pred_region
      %62 = dma.done [#allocation4], 384
    $region21: #{tpu_custom_call.1} parent=1 // pred_fallthru
      _
    %63 = vsyncpa [#allocation3], 1
    %64 = vsyncpa [#allocation4], 1

</llo_original>
